<compile_context>
chip_gen: v6e
topology: v6e:2x2x1
jax: 0.10.0
libtpu: 0.0.40
codegen_flags: <defaults>
</compile_context>

<pallas_src>
import jax
import jax.numpy as jnp
from jax.experimental import pallas as pl
from jax.experimental.pallas import tpu as pltpu

EPS = 1e-9  # stand-in for xnn.EPS (small epsilon guarding the reciprocal)

_TARGET_BLOCK_BYTES = 2 << 20   # ~2 MiB per block -> 4 live x/out buffers ~ 8 MiB
_MAX_LANE_TILE = 2048           # lanes beyond ~512 flatten the roofline curve
_LANE_QUANTUM = 128


def _snake_kernel(x_ref, alpha_ref, o_ref):
    # x_ref / o_ref: (tR, tT) block in VMEM; alpha_ref: (tR, 1) per-row alpha.
    # All math in f32 regardless of I/O dtype (supports bf16 I/O).
    x = x_ref[...].astype(jnp.float32)
    a = alpha_ref[...].astype(jnp.float32)          # (tR, 1), broadcasts over lanes
    inv = 1.0 / (a + EPS)
    s = jnp.sin(a * x)
    o_ref[...] = (x + inv * (s * s)).astype(o_ref.dtype)


def _pick_tiles(R, T, itemsize):
    """Byte-based tile sizing: ~_TARGET_BLOCK_BYTES per block, lane dim a
    multiple of 128 (or full extent), row dim a multiple of the sublane
    quantum (8 for 4-byte, 16 for 2-byte dtypes) or the full extent."""
    sub = 8 if itemsize >= 4 else 16
    # Lane (time) tile.
    if T <= _MAX_LANE_TILE:
        tT = T                                   # full extent is always valid
    else:
        tT = _MAX_LANE_TILE                      # multiple of 128
    # Row tile: fill the byte budget.
    max_tr = max(1, _TARGET_BLOCK_BYTES // (tT * itemsize))
    if max_tr >= R:
        tR = R                                   # full extent is always valid
    else:
        tR = max(sub, (max_tr // sub) * sub)
        tR = min(tR, R)
    return tR, tT


def snake1d(x, alpha, *, row_tile=None, time_tile=None):
    """Snake activation. x: (B, C, T), alpha: (1, C, 1). Output dtype == x.dtype."""
    B, C, T = x.shape
    assert alpha.shape == (1, C, 1)
    R = B * C

    # Flatten batch+channel into a single row axis -> 2-D (rows, time) tiling
    # whose block size is independent of C.
    x2 = x.reshape(R, T)
    # One alpha value per flattened row (tiny materialization).
    a2 = jnp.broadcast_to(jnp.reshape(alpha, (1, C, 1)), (B, C, 1)).reshape(R, 1)

    itemsize = jnp.dtype(x.dtype).itemsize
    auto_tr, auto_tt = _pick_tiles(R, T, itemsize)
    tR = min(row_tile, R) if row_tile is not None else auto_tr
    tT = min(time_tile, T) if time_tile is not None else auto_tt

    grid = (pl.cdiv(R, tR), pl.cdiv(T, tT))
    out = pl.pallas_call(
        _snake_kernel,
        out_shape=jax.ShapeDtypeStruct((R, T), x.dtype),
        grid_spec=pltpu.PrefetchScalarGridSpec(
            num_scalar_prefetch=0,
            grid=grid,
            in_specs=[
                pl.BlockSpec((tR, tT), lambda r, t: (r, t)),
                pl.BlockSpec((tR, 1), lambda r, t: (r, 0)),
            ],
            out_specs=pl.BlockSpec((tR, tT), lambda r, t: (r, t)),
        ),
        compiler_params=pltpu.CompilerParams(
            # Both axes independent -> megacore sharding on v7x; harmless elsewhere.
            dimension_semantics=("parallel", "parallel"),
        ),
    )(x2, a2)
    return out.reshape(B, C, T)


def snake1d_ref(x, alpha):
    # Pure-JAX reference matching the PyTorch forward exactly (f32 math).
    return x + (1.0 / (alpha + EPS)) * jnp.sin(alpha * x) ** 2


if __name__ == "__main__":
    key = jax.random.PRNGKey(0)
    kx, ka = jax.random.split(key)

    # Small but tile-friendly shapes consistent with the module.
    B, C, T = 2, 8, 1024
    x = jax.random.normal(kx, (B, C, T), dtype=jnp.float32)

    # Module __init__ sets alpha = ones(1, C, 1); perturb deterministically so
    # the per-channel broadcast is actually exercised.
    alpha = jnp.ones((1, C, 1), dtype=jnp.float32) + 0.1 * jax.random.normal(
        ka, (1, C, 1), dtype=jnp.float32
    )

    ref = snake1d_ref(x, alpha)

    # Explicit small tiles force a multi-block grid (grid = (2, 4)) so the
    # tiled/ragged-free path is actually exercised.
    out = jax.block_until_ready(snake1d(x, alpha, row_tile=8, time_tile=256))
    assert out.shape == (B, C, T)
    assert jnp.allclose(out, ref, atol=1e-5, rtol=1e-5), (
        f"max abs err {jnp.max(jnp.abs(out - ref))}"
    )

    # Auto-sized (byte-budgeted) tile path.
    out2 = jax.block_until_ready(snake1d(x, alpha))
    assert jnp.allclose(out2, ref, atol=1e-5, rtol=1e-5)

    # bf16 I/O with f32 math inside — halves HBM traffic for this mem-bound op.
    xb = x.astype(jnp.bfloat16)
    outb = jax.block_until_ready(snake1d(xb, alpha))
    refb = snake1d_ref(xb.astype(jnp.float32), alpha).astype(jnp.bfloat16)
    assert jnp.allclose(
        outb.astype(jnp.float32), refb.astype(jnp.float32), atol=3e-2, rtol=3e-2
    )

    print("KERNEL_OK")
</pallas_src>

<mosaic_0001>
module attributes {stable_mosaic.version = 11 : i64} {
  func.func @_snake_kernel(%arg0: i32, %arg1: i32, %arg2: memref<8x256xf32, #tpu.memory_space<vmem>>, %arg3: memref<8x1xf32, #tpu.memory_space<vmem>>, %arg4: memref<8x256xf32, #tpu.memory_space<vmem>>) attributes {dimension_semantics = [#tpu.dimension_semantics<parallel>, #tpu.dimension_semantics<parallel>], iteration_bounds = array<i64: 2, 4>, scalar_prefetch = 0 : i64, scratch_operands = 0 : i64, tpu.core_type = #tpu.core_type<tc>, window_params = [{transform_indices = @transform_0, window_bounds = array<i64: 8, 256>}, {transform_indices = @transform_1, window_bounds = array<i64: 8, 1>}, {transform_indices = @transform_2, window_bounds = array<i64: 8, 256>}]} {
    %c0 = arith.constant 0 : index
    %c0_0 = arith.constant 0 : index
    %0 = vector.load %arg2[%c0, %c0_0] : memref<8x256xf32, #tpu.memory_space<vmem>>, vector<8x256xf32>
    %c0_1 = arith.constant 0 : index
    %c0_2 = arith.constant 0 : index
    %1 = vector.load %arg3[%c0_1, %c0_2] : memref<8x1xf32, #tpu.memory_space<vmem>>, vector<8x1xf32>
    %cst = arith.constant 9.99999971E-10 : f32
    %2 = vector.broadcast %cst : f32 to vector<8x1xf32>
    %3 = arith.addf %1, %2 : vector<8x1xf32>
    %cst_3 = arith.constant 1.000000e+00 : f32
    %4 = vector.broadcast %cst_3 : f32 to vector<8x1xf32>
    %5 = arith.divf %4, %3 : vector<8x1xf32>
    %6 = vector.broadcast %1 : vector<8x1xf32> to vector<8x256xf32>
    %7 = arith.mulf %6, %0 : vector<8x256xf32>
    %8 = math.sin %7 : vector<8x256xf32>
    %9 = arith.mulf %8, %8 : vector<8x256xf32>
    %10 = vector.broadcast %5 : vector<8x1xf32> to vector<8x256xf32>
    %11 = arith.mulf %10, %9 : vector<8x256xf32>
    %12 = arith.addf %0, %11 : vector<8x256xf32>
    %c0_4 = arith.constant 0 : index
    %c0_5 = arith.constant 0 : index
    %13 = vector.load %arg4[%c0_4, %c0_5] : memref<8x256xf32, #tpu.memory_space<vmem>>, vector<8x256xf32>
    tpu.vector_store %arg4[%c0_4, %c0_5], %12 {strides = array<i32>} : memref<8x256xf32, #tpu.memory_space<vmem>>, vector<8x256xf32>,
    return
  }
  func.func @transform_0(%arg0: i32, %arg1: i32) -> (i32, i32) {
    %c0_i32 = arith.constant 0 : i32
    return %arg0, %arg1 : i32, i32
  }
  func.func @transform_1(%arg0: i32, %arg1: i32) -> (i32, i32) {
    %c0_i32 = arith.constant 0 : i32
    %c0_i32_0 = arith.constant 0 : i32
    return %arg0, %c0_i32 : i32, i32
  }
  func.func @transform_2(%arg0: i32, %arg1: i32) -> (i32, i32) {
    %c0_i32 = arith.constant 0 : i32
    return %arg0, %arg1 : i32, i32
  }
}

</mosaic_0001>

<llo_original>
// kernel: tpu_custom_call.1
$region0: #{tpu_custom_call.1}
  #allocation0 [shape = 'u32[]', space=smem, size = 0x4, offset = 0x4, fixed_abs, tag = 'smem constant byte address 0x4 - core index']
  #allocation1 [shape = 'u32[144,128]{1,0:T(1,128)}', space=vmem, size = 0x12000, scoped, tag = 'internal scratch']
  %s0 = inlined_call_operand.hbm [shape: f32[16,1024], index: 0, kind: input, shape index: {}]
  %s1 = inlined_call_operand.vmem [shape: f32[16,1], index: 1, kind: input, shape index: {}]
  %s2 = inlined_call_operand.hbm [shape: f32[16,1024], index: 2, kind: output, shape index: {}]
  %s3 = sld [smem:[#allocation0]]
  $region45: #{tpu_custom_call.1} parent=0
    _
  %s5 = ssub.s32 1, %s3
  %s6 = scalar_select 0, %s5, %s3
  $region1: #{tpu_custom_call.1} parent=0
    #allocation2 [shape = 'u8[16384]{0}', space=vmem, size = 0x4000, scoped, tag = 'input window, operand 0']
    #allocation3 [shape = 's32[2]{0}', space=sflag, size = 0x8, scoped, tag = 'scoped memory for tpu_custom_call.1']
    #allocation4 [shape = 's32[2]{0}', space=sflag, size = 0x8, scoped, tag = 'scoped memory for tpu_custom_call.1']
    #allocation5 [shape = 'u8[16384]{0}', space=vmem, size = 0x4000, scoped, tag = 'output window, operand 0']
    %7 = vsyncpa [#allocation3], 0
    %s8 = scalar_lea.sflag [#allocation3], 1
    %9 = vsyncpa %s8, 0
    %10 = vsyncpa [#allocation4], 0
    %s11 = scalar_lea.sflag [#allocation4], 1
    %12 = vsyncpa %s11, 0
    loop: start=0, step=1, limit=10
    $region2: #{tpu_custom_call.1} parent=1 // loop_pre_header
      _
    $region3: #{tpu_custom_call.1} parent=1 // loop_header
      %s14 = sphi 0, %s18
      %p15 = scmp.ge.s32.totalorder %s14, 10
      %s21 = sphi 0, %s33
      %s22 = sphi 0, %s29
      %s23 = sphi 0, %s21
      %s24 = sphi 0, %s22
      %s25 = sphi 0, %s23
      %s26 = sphi 0, %s24
      %s38 = sphi 0, %s40
      %s41 = sphi 0, %s38
      %s42 = sphi 0, %s41
      %s58 = sphi 0, %s42
      %s64 = sphi 0, %s66
      %s67 = sphi 0, %s64
      %s68 = sphi 0, %s67
      %s84 = sphi 0, %s68
      %s92 = sphi 0, %s94
      %s95 = sphi 0, %s92
      %s96 = sphi 0, %s95
      %s112 = sphi 0, %s96
    $region4: #{tpu_custom_call.1} parent=1 // loop_header_branch
      %17 = sbr.rel (%p15) target = $region8
    $region5: #{tpu_custom_call.1} parent=1 // loop_body
      %s19 = ssub.s32 %s14, 1
      %s20 = ssub.s32 %s14, 2
      %s27 = sadd.s32 1, %s22
      %p28 = scmp.ge.s32.totalorder %s27, 4
      %s29 = scalar_select %p28, 0, %s27
      %s30 = sadd.s32 1, %s21
      %s31 = scalar_select %p28, %s30, %s21
      %p32 = scmp.ge.s32.totalorder %s31, 2
      %s33 = scalar_select %p32, 0, %s31
      %s34 = ssub.s32 %s21, %s33
      %s35 = ssub.s32 %s22, %s29
      %s36 = sor.u32 %s34, %s35
      %p37 = scmp.eq.s32.totalorder %s36, 0
      %s39 = sadd.s32 %s38, 1
      %s40 = scalar_select %p37, %s38, %s39
      %p43 = pneg %p37
      %p44 = scmp.eq.s32.totalorder %s14, 7
      %p45 = por %p43, %p44
      %p46 = scmp.ne.s32.totalorder %s38, %s41
      %p47 = scmp.eq.s32.totalorder %s14, 0
      %p48 = por %p46, %p47
      %p49 = scmp.ne.s32.totalorder %s38, %s41
      %p50 = scmp.eq.s32.totalorder %s19, 7
      %p51 = por %p49, %p50
      %p52 = scmp.ne.s32.totalorder %s41, %s42
      %p53 = scmp.eq.s32.totalorder %s19, 0
      %p54 = por %p52, %p53
      %p55 = scmp.ne.s32.totalorder %s41, %s42
      %p56 = scmp.eq.s32.totalorder %s20, 7
      %p57 = por %p55, %p56
      %p59 = scmp.ne.s32.totalorder %s42, %s58
      %p60 = scmp.eq.s32.totalorder %s20, 0
      %p61 = por %p59, %p60
      %s62 = ssub.s32 %s21, %s33
      %p63 = scmp.eq.s32.totalorder %s62, 0
      %s65 = sadd.s32 %s64, 1
      %s66 = scalar_select %p63, %s64, %s65
      %p69 = pneg %p63
      %p70 = scmp.eq.s32.totalorder %s14, 7
      %p71 = por %p69, %p70
      %p72 = scmp.ne.s32.totalorder %s64, %s67
      %p73 = scmp.eq.s32.totalorder %s14, 0
      %p74 = por %p72, %p73
      %p75 = scmp.ne.s32.totalorder %s64, %s67
      %p76 = scmp.eq.s32.totalorder %s19, 7
      %p77 = por %p75, %p76
      %p78 = scmp.ne.s32.totalorder %s67, %s68
      %p79 = scmp.eq.s32.totalorder %s19, 0
      %p80 = por %p78, %p79
      %p81 = scmp.ne.s32.totalorder %s67, %s68
      %p82 = scmp.eq.s32.totalorder %s20, 7
      %p83 = por %p81, %p82
      %p85 = scmp.ne.s32.totalorder %s68, %s84
      %p86 = scmp.eq.s32.totalorder %s20, 0
      %p87 = por %p85, %p86
      %s88 = ssub.s32 %s21, %s33
      %s89 = ssub.s32 %s22, %s29
      %s90 = sor.u32 %s88, %s89
      %p91 = scmp.eq.s32.totalorder %s90, 0
      %s93 = sadd.s32 %s92, 1
      %s94 = scalar_select %p91, %s92, %s93
      %p97 = pneg %p91
      %p98 = scmp.eq.s32.totalorder %s14, 7
      %p99 = por %p97, %p98
      %p100 = scmp.ne.s32.totalorder %s92, %s95
      %p101 = scmp.eq.s32.totalorder %s14, 0
      %p102 = por %p100, %p101
      %p103 = scmp.ne.s32.totalorder %s92, %s95
      %p104 = scmp.eq.s32.totalorder %s19, 7
      %p105 = por %p103, %p104
      %p106 = scmp.ne.s32.totalorder %s95, %s96
      %p107 = scmp.eq.s32.totalorder %s19, 0
      %p108 = por %p106, %p107
      %p109 = scmp.ne.s32.totalorder %s95, %s96
      %p110 = scmp.eq.s32.totalorder %s20, 7
      %p111 = por %p109, %p110
      %p113 = scmp.ne.s32.totalorder %s96, %s112
      %p114 = scmp.eq.s32.totalorder %s20, 0
      %p115 = por %p113, %p114
      %p116 = scmp.le.s32.totalorder 1, %s14
      %p117 = scmp.lt.s32.totalorder %s14, 9
      %p118 = pnand %p116, %p117
      %p119 = pneg %p118
      // Predicated region
      $region9: #{tpu_custom_call.1} parent=5 // pred_check
        _
      $region10: #{tpu_custom_call.1} parent=5 // pred_check_branch
        %121 = sbr.rel (%p118) target = $region12
      $region11: #{tpu_custom_call.1} parent=5 // pred_region
        %s122 = ssub.s32 %s14, 1
      $region12: #{tpu_custom_call.1} parent=5 // pred_fallthru
        _
      %p123 = scmp.lt.s32.totalorder %s14, 8
      // Predicated region
      $region13: #{tpu_custom_call.1} parent=5 // pred_check
        %p124 = pneg %p123
      $region14: #{tpu_custom_call.1} parent=5 // pred_check_branch
        %126 = sbr.rel (%p124) target = $region16
      $region15: #{tpu_custom_call.1} parent=5 // pred_region
        // Predicated region
        $region17: #{tpu_custom_call.1} parent=15 // pred_check
          %p127 = pneg %p48
        $region18: #{tpu_custom_call.1} parent=15 // pred_check_branch
          %129 = sbr.rel (%p127) target = $region20
        $region19: #{tpu_custom_call.1} parent=15 // pred_region
          %s130 = sand.u32 %s38, 1
          %s131 = scalar_lea.sflag [#allocation3], %s130
          %s132 = sand.u32 %s38, 1
          %s133 = smul.addr %s132, 16
          %s134 = scalar_lea.vmem [#allocation2], %s133
          %s135 = smul.u32 2, %s22
          %s137 = ssub.s32 256, 256
          %138 = vsyncadd %s131, %s137
          %s139 = smul.addr %s21, 8
          %s140 = sadd.s32 %s135, %s139
          %s141 = smul.addr %s140, 128
          %s142 = scalar_lea.hbm %s0, %s141
          %s144 = sshll.u32 %s134, 4
          %s145 = int_to_ptr.vmem [resolvable:$true] %s144
          %147 = dma.hbm_to_vmem [thread:$0]  %s142, 256, %s145, %s131
        $region20: #{tpu_custom_call.1} parent=15 // pred_fallthru
          _
        // Predicated region
        $region21: #{tpu_custom_call.1} parent=15 // pred_check
          %p148 = pneg %p74
        $region22: #{tpu_custom_call.1} parent=15 // pred_check_branch
          %150 = sbr.rel (%p148) target = $region24
        $region23: #{tpu_custom_call.1} parent=15 // pred_region
          %p151 = scmp.lt.s32.totalorder %s21, 1
          %s152 = scalar_select %p151, %s21, 1
          %s153 = smul.addr %s152, 8
          %s154 = scalar_lea.vmem %s1, %s153
        $region24: #{tpu_custom_call.1} parent=15 // pred_fallthru
          _
      $region16: #{tpu_custom_call.1} parent=5 // pred_fallthru
        _
      %p155 = scmp.le.s32.totalorder 1, %s14
      %p156 = scmp.lt.s32.totalorder %s14, 9
      %p157 = pnand %p155, %p156
      %p158 = pneg %p157
      // Predicated region
      $region25: #{tpu_custom_call.1} parent=5 // pred_check
        _
      $region26: #{tpu_custom_call.1} parent=5 // pred_check_branch
        %160 = sbr.rel (%p157) target = $region28
      $region27: #{tpu_custom_call.1} parent=5 // pred_region
        %s161 = ssub.s32 %s14, 1
        %s162 = sand.u32 %s41, 1
        %s163 = scalar_lea.sflag [#allocation3], %s162
        %s164 = sand.u32 %s41, 1
        %s165 = smul.addr %s164, 16
        %s166 = scalar_lea.vmem [#allocation2], %s165
        // Predicated region
        $region29: #{tpu_custom_call.1} parent=27 // pred_check
          %p167 = pneg %p54
        $region30: #{tpu_custom_call.1} parent=27 // pred_check_branch
          %169 = sbr.rel (%p167) target = $region32
        $region31: #{tpu_custom_call.1} parent=27 // pred_region
          %170 = dma.done %s163, 256
        $region32: #{tpu_custom_call.1} parent=27 // pred_fallthru
          _
        %s171 = sand.u32 %s41, 1
        %s172 = scalar_lea.sflag [#allocation3], %s171
        %s173 = sand.u32 %s41, 1
        %s174 = smul.addr %s173, 16
        %s175 = scalar_lea.vmem [#allocation2], %s174
        %p176 = pneg %p54
        %p177 = pneg %p51
        %p178 = scmp.lt.s32.totalorder %s23, 1
        %s179 = scalar_select %p178, %s23, 1
        %s180 = smul.addr %s179, 8
        %s181 = scalar_lea.vmem %s1, %s180
        %p182 = pneg %p80
        %p183 = pneg %p77
        %p184 = pneg %p108
        %p185 = pneg %p105
        %s186 = sand.u32 %s95, 1
        %s187 = scalar_lea.sflag [#allocation4], %s186
        %s188 = sand.u32 %s95, 1
        %s189 = smul.addr %s188, 16
        %s190 = scalar_lea.vmem [#allocation5], %s189
        %s191 = smul.u32 2, %s24
        %p192 = scmp.lt.s32.totalorder %s23, 1
        %s193 = scalar_select %p192, %s23, 1
        %s194 = smul.addr %s193, 8
        %s195 = scalar_lea.vmem %s1, %s194
        %s196 = smul.u32 2, %s24
        %v197 = vld [vmem:[%s166] sm:$0xff]
        %v198 = vld [vmem:[%s166 + $0x8] sm:$0xff]
        %v199 = vld [vmem:[%s195] sm:$0xff]
        %v200 = vadd.f32 %v199, 1e-09
        %v201 = vrcp.pop %v200
        %v202 = vmul.f32 1.0, %v201
        %204 = vset.pattern.permute.xlu0 0
        %205 = vperm.xlu0 %204, %v199
        %v206 = vpop.permute.xlu0 %205
        %v208 = vmul.f32 %v206, %v197
        %v209 = vmul.f32 %v206, %v198
        %v210 = vand.u32 2147483647, %v208
        %vm211 = vcmp.le.f32.partialorder %v210, 0.7853982
        %vm212 = vcmp.lt.s32.totalorder %v208, 0
        %v213 = vand.u32 %v208, 2139095040
        %v214 = vshrl.u32 %v213, 23
        %v215 = vsub.s32 %v214, 127
        %v216 = vand.u32 2147483647, %v208
        %v217 = vand.u32 %v216, 8388607
        %v218 = vor.u32 %v217, 8388608
        %v219 = vsub.s32 0, %v218
        %v220 = vadd.s32 %v215, 1
        %vm221 = vcmp.gt.s32.totalorder %v220, 0
        %v222 = vsel %vm221, %v220, 0
        %v223 = vshrl.u32 %v222, 5
        %v224 = vand.u32 %v222, 31
        %v225 = vsub.s32 32, %v224
        %v226 = vshrl.u32 683565275, %v225
        %v227 = vshll.u32 683565275, %v224
        %v228 = vshrl.u32 2475754826, %v225
        %v229 = vor.u32 %v227, %v228
        %v230 = vshll.u32 2475754826, %v224
        %v231 = vshrl.u32 2131351028, %v225
        %v232 = vor.u32 %v230, %v231
        %v233 = vshll.u32 2131351028, %v224
        %v234 = vshrl.u32 2102212464, %v225
        %v235 = vor.u32 %v233, %v234
        %v236 = vshll.u32 2102212464, %v224
        %v237 = vshrl.u32 920167782, %v225
        %v238 = vor.u32 %v236, %v237
        %v239 = vshll.u32 920167782, %v224
        %v240 = vshrl.u32 1326507024, %v225
        %v241 = vor.u32 %v239, %v240
        %vm242 = vcmp.lt.s32.totalorder %v223, 1
        %vm243 = vcmp.lt.s32.totalorder %v223, 2
        %vm244 = vcmp.lt.s32.totalorder %v223, 3
        %vm245 = vcmp.lt.s32.totalorder %v223, 4
        %v246 = vsel %vm242, %v226, %v229
        %v247 = vsel %vm245, %v235, 2102212464
        %v248 = vsel %vm244, %v232, %v247
        %v249 = vsel %vm243, %v246, %v248
        %v250 = vsel %vm242, %v229, %v232
        %v251 = vsel %vm245, %v238, 920167782
        %v252 = vsel %vm244, %v235, %v251
        %v253 = vsel %vm243, %v250, %v252
        %v254 = vsel %vm242, %v232, %v235
        %v255 = vsel %vm245, %v241, 1326507024
        %v256 = vsel %vm244, %v238, %v255
        %v257 = vsel %vm243, %v254, %v256
        %v258 = vshll.u32 %v218, 8
        %v259 = vmul.u32.u64.compose %v258, %v257
        %v260 = vextract.low.u32 %v259
        %v261 = vextract.high.u32 %v259
        %v262 = vmul.u32.u64.compose %v258, %v253
        %v263 = vextract.low.u32 %v262
        %v264 = vextract.high.u32 %v262
        %v265 = vmul.u32 %v258, %v249
        %v266 = vadd.s32 %v261, %v263
        %vm267 = vc.u32 %v261, %v263
        %v268 = vadd.s32 %v264, 1
        %v269 = vsel %vm267, %v268, %v264
        %v270 = vadd.s32 %v265, %v269
        %v271 = vadd.s32 %v270, 536870912
        %v272 = vshrl.u32 %v271, 30
        %v273 = vshll.u32 %v272, 30
        %v274 = vsub.s32 %v270, %v273
        %vm275 = vcmp.lt.s32.totalorder %v274, 0
        %v276 = vsub.s32 0, %v274
        %v277 = vsel %vm275, %v276, %v274
        %v278 = vclz %v277
        %v279 = vsub.s32 %v278, 2
        %vm280 = vcmp.gt.s32.totalorder 0, %v279
        %v281 = vsel %vm280, 0, %v279
        %v282 = vsub.s32 32, %v281
        %v283 = vshll.u32 %v274, %v281
        %v284 = vshrl.u32 %v266, %v282
        %v285 = vor.u32 %v283, %v284
        %v286 = vsub.s32 4294967266, %v281
        %v287 = vadd.s32 %v286, 127
        %v288 = vshll.u32 %v287, 23
        %v289 = vor.u32 4788187, %v288
        %v290 = vand.u32 2147483647, %v289
        %v292 = vcvt.s32.f32 %v285
        %v293 = vmul.f32 %v292, %v290
        %v294 = vxor.u32 %v293, 2147483648
        %v295 = vsel %vm212, %v294, %v293
        %v296 = vsub.s32 4, %v272
        %v297 = vsel %vm212, %v296, %v272
        %v298 = vsel %vm211, %v208, %v295
        %v299 = vsel %vm211, 0, %v297
        %v300 = vcosq.f32.pop %v298
        %v301 = vsinq.f32.pop %v298
        %vm302 = vweird.f32 %v208
        %v303 = vadd.s32 %v299, 3
        %v304 = vand.u32 %v303, 3
        %vm305 = vcmp.lt.s32.totalorder %v304, 2
        %vm306 = vcmp.eq.s32.totalorder %v304, 0
        %v307 = vxor.u32 %v301, 2147483648
        %v308 = vsel %vm306, %v300, %v307
        %vm309 = vcmp.eq.s32.totalorder %v304, 2
        %v310 = vxor.u32 %v300, 2147483648
        %v311 = vsel %vm309, %v310, %v301
        %v312 = vsel %vm305, %v308, %v311
        %v313 = vsel %vm302, nan, %v312
        %v314 = vand.u32 2147483647, %v209
        %vm315 = vcmp.le.f32.partialorder %v314, 0.7853982
        %vm316 = vcmp.lt.s32.totalorder %v209, 0
        %v317 = vand.u32 %v209, 2139095040
        %v318 = vshrl.u32 %v317, 23
        %v319 = vsub.s32 %v318, 127
        %v320 = vand.u32 2147483647, %v209
        %v321 = vand.u32 %v320, 8388607
        %v322 = vor.u32 %v321, 8388608
        %v323 = vsub.s32 0, %v322
        %v324 = vadd.s32 %v319, 1
        %vm325 = vcmp.gt.s32.totalorder %v324, 0
        %v326 = vsel %vm325, %v324, 0
        %v327 = vshrl.u32 %v326, 5
        %v328 = vand.u32 %v326, 31
        %v329 = vsub.s32 32, %v328
        %v330 = vshrl.u32 683565275, %v329
        %v331 = vshll.u32 683565275, %v328
        %v332 = vshrl.u32 2475754826, %v329
        %v333 = vor.u32 %v331, %v332
        %v334 = vshll.u32 2475754826, %v328
        %v335 = vshrl.u32 2131351028, %v329
        %v336 = vor.u32 %v334, %v335
        %v337 = vshll.u32 2131351028, %v328
        %v338 = vshrl.u32 2102212464, %v329
        %v339 = vor.u32 %v337, %v338
        %v340 = vshll.u32 2102212464, %v328
        %v341 = vshrl.u32 920167782, %v329
        %v342 = vor.u32 %v340, %v341
        %v343 = vshll.u32 920167782, %v328
        %v344 = vshrl.u32 1326507024, %v329
        %v345 = vor.u32 %v343, %v344
        %vm346 = vcmp.lt.s32.totalorder %v327, 1
        %vm347 = vcmp.lt.s32.totalorder %v327, 2
        %vm348 = vcmp.lt.s32.totalorder %v327, 3
        %vm349 = vcmp.lt.s32.totalorder %v327, 4
        %v350 = vsel %vm346, %v330, %v333
        %v351 = vsel %vm349, %v339, 2102212464
        %v352 = vsel %vm348, %v336, %v351
        %v353 = vsel %vm347, %v350, %v352
        %v354 = vsel %vm346, %v333, %v336
        %v355 = vsel %vm349, %v342, 920167782
        %v356 = vsel %vm348, %v339, %v355
        %v357 = vsel %vm347, %v354, %v356
        %v358 = vsel %vm346, %v336, %v339
        %v359 = vsel %vm349, %v345, 1326507024
        %v360 = vsel %vm348, %v342, %v359
        %v361 = vsel %vm347, %v358, %v360
        %v362 = vshll.u32 %v322, 8
        %v363 = vmul.u32.u64.compose %v362, %v361
        %v364 = vextract.low.u32 %v363
        %v365 = vextract.high.u32 %v363
        %v366 = vmul.u32.u64.compose %v362, %v357
        %v367 = vextract.low.u32 %v366
        %v368 = vextract.high.u32 %v366
        %v369 = vmul.u32 %v362, %v353
        %v370 = vadd.s32 %v365, %v367
        %vm371 = vc.u32 %v365, %v367
        %v372 = vadd.s32 %v368, 1
        %v373 = vsel %vm371, %v372, %v368
        %v374 = vadd.s32 %v369, %v373
        %v375 = vadd.s32 %v374, 536870912
        %v376 = vshrl.u32 %v375, 30
        %v377 = vshll.u32 %v376, 30
        %v378 = vsub.s32 %v374, %v377
        %vm379 = vcmp.lt.s32.totalorder %v378, 0
        %v380 = vsub.s32 0, %v378
        %v381 = vsel %vm379, %v380, %v378
        %v382 = vclz %v381
        %v383 = vsub.s32 %v382, 2
        %vm384 = vcmp.gt.s32.totalorder 0, %v383
        %v385 = vsel %vm384, 0, %v383
        %v386 = vsub.s32 32, %v385
        %v387 = vshll.u32 %v378, %v385
        %v388 = vshrl.u32 %v370, %v386
        %v389 = vor.u32 %v387, %v388
        %v390 = vsub.s32 4294967266, %v385
        %v391 = vadd.s32 %v390, 127
        %v392 = vshll.u32 %v391, 23
        %v393 = vor.u32 4788187, %v392
        %v394 = vand.u32 2147483647, %v393
        %v396 = vcvt.s32.f32 %v389
        %v397 = vmul.f32 %v396, %v394
        %v398 = vxor.u32 %v397, 2147483648
        %v399 = vsel %vm316, %v398, %v397
        %v400 = vsub.s32 4, %v376
        %v401 = vsel %vm316, %v400, %v376
        %v402 = vsel %vm315, %v209, %v399
        %v403 = vsel %vm315, 0, %v401
        %v404 = vcosq.f32.pop %v402
        %v405 = vsinq.f32.pop %v402
        %vm406 = vweird.f32 %v209
        %v407 = vadd.s32 %v403, 3
        %v408 = vand.u32 %v407, 3
        %vm409 = vcmp.lt.s32.totalorder %v408, 2
        %vm410 = vcmp.eq.s32.totalorder %v408, 0
        %v411 = vxor.u32 %v405, 2147483648
        %v412 = vsel %vm410, %v404, %v411
        %vm413 = vcmp.eq.s32.totalorder %v408, 2
        %v414 = vxor.u32 %v404, 2147483648
        %v415 = vsel %vm413, %v414, %v405
        %v416 = vsel %vm409, %v412, %v415
        %v417 = vsel %vm406, nan, %v416
        %v418 = vmul.f32 %v313, %v313
        %v419 = vmul.f32 %v417, %v417
        %421 = vset.pattern.permute.xlu0 0
        %422 = vperm.xlu0 %421, %v202
        %v423 = vpop.permute.xlu0 %422
        %v425 = vmul.f32 %v423, %v418
        %v426 = vmul.f32 %v423, %v419
        %v427 = vadd.f32 %v197, %v425
        %v428 = vadd.f32 %v198, %v426
        %429 = vst [vmem:[%s190] sm:$0xff] %v427
        %430 = vst [vmem:[%s190 + $0x8] sm:$0xff] %v428
        %s431 = sand.u32 %s95, 1
        %s432 = scalar_lea.sflag [#allocation4], %s431
        %s433 = sand.u32 %s95, 1
        %s434 = smul.addr %s433, 16
        %s435 = scalar_lea.vmem [#allocation5], %s434
        // Predicated region
        $region33: #{tpu_custom_call.1} parent=27 // pred_check
          %p436 = pneg %p105
        $region34: #{tpu_custom_call.1} parent=27 // pred_check_branch
          %438 = sbr.rel (%p436) target = $region36
        $region35: #{tpu_custom_call.1} parent=27 // pred_region
          %s439 = smul.u32 2, %s24
          %s441 = ssub.s32 256, 256
          %442 = vsyncadd %s432, %s441
          %s443 = smul.addr %s23, 8
          %s444 = sadd.s32 %s439, %s443
          %s445 = smul.addr %s444, 128
          %s446 = scalar_lea.hbm %s2, %s445
          %s448 = sshll.u32 %s435, 4
          %s449 = int_to_ptr.vmem [resolvable:$true] %s448
          %451 = dma.vmem_to_hbm [thread:$0]  %s449, 256, %s446, %s432
        $region36: #{tpu_custom_call.1} parent=27 // pred_fallthru
          _
      $region28: #{tpu_custom_call.1} parent=5 // pred_fallthru
        _
      %p452 = scmp.le.s32.totalorder 2, %s14
      // Predicated region
      $region37: #{tpu_custom_call.1} parent=5 // pred_check
        %p453 = pneg %p452
      $region38: #{tpu_custom_call.1} parent=5 // pred_check_branch
        %455 = sbr.rel (%p453) target = $region40
      $region39: #{tpu_custom_call.1} parent=5 // pred_region
        %s456 = ssub.s32 %s14, 2
        // Predicated region
        $region41: #{tpu_custom_call.1} parent=39 // pred_check
          %p457 = pneg %p111
        $region42: #{tpu_custom_call.1} parent=39 // pred_check_branch
          %459 = sbr.rel (%p457) target = $region44
        $region43: #{tpu_custom_call.1} parent=39 // pred_region
          %s460 = sand.u32 %s96, 1
          %s461 = scalar_lea.sflag [#allocation4], %s460
          %s462 = sand.u32 %s96, 1
          %s463 = smul.addr %s462, 16
          %s464 = scalar_lea.vmem [#allocation5], %s463
          %465 = dma.done %s461, 256
        $region44: #{tpu_custom_call.1} parent=39 // pred_fallthru
          _
      $region40: #{tpu_custom_call.1} parent=5 // pred_fallthru
        _
    $region6: #{tpu_custom_call.1} parent=1 // loop_footer
      %s18 = sadd.s32 1, %s14
    $region7: #{tpu_custom_call.1} parent=1 // loop_footer_branch
      %13 = sbr.rel target = $region3
    $region8: #{tpu_custom_call.1} parent=1 // loop_exit
      _
    %466 = vsyncpa [#allocation3], 1
    %s467 = scalar_lea.sflag [#allocation3], 1
    %468 = vsyncpa %s467, 1
    %469 = vsyncpa [#allocation4], 1
    %s470 = scalar_lea.sflag [#allocation4], 1
    %471 = vsyncpa %s470, 1

</llo_original>
